<compile_context>
chip_gen: v7x
topology: tpu7x:2x2x1
jax: 0.10.0
libtpu: 0.0.40
codegen_flags: <defaults>
</compile_context>

<pallas_src>
import jax
import jax.numpy as jnp
from jax.experimental import pallas as pl
from jax.experimental.pallas import tpu as pltpu

BN_EPS = 1e-5
LANE = 128
DEFAULT_TILE_N = 512   # fits comfortably under v5e/v6e/v7x scoped-VMEM defaults


def _round_up(x, m):
    return ((x + m - 1) // m) * m


def _make_kernel(n_total, tile_n):
    def kernel(x_ref, w1_ref, b1_ref, g_ref, be_ref, w2_ref, b2_ref,
               o_ref, mean_ref, m2_ref):
        # x_ref: (tile_n, C_pad) bf16       w1_ref: (C_pad, P_pad) bf16
        # b1/g/be: (1, P_pad) f32           w2_ref: (P_pad, C_pad) bf16
        # b2: (1, C_pad) f32                o_ref: (tile_n, C_pad)
        # mean_ref / m2_ref: (1, P_pad) f32 persistent VMEM scratch
        p = pl.program_id(0)   # 0 = batch-stats pass, 1 = normalize + project pass
        i = pl.program_id(1)   # N-tile index

        @pl.when(jnp.logical_and(p == 0, i == 0))
        def _init():
            mean_ref[...] = jnp.zeros_like(mean_ref)
            m2_ref[...] = jnp.zeros_like(m2_ref)

        # Linear 1 on the MXU: bf16 operands, f32 accumulation.
        h = jnp.dot(x_ref[...], w1_ref[...],
                    preferred_element_type=jnp.float32) + b1_ref[...]

        @pl.when(p == 0)
        def _stats():
            # Valid-row mask: only the last tile can contain zero-padded rows.
            row_start = i * tile_n
            row_ids = jax.lax.broadcasted_iota(jnp.int32, (tile_n, 1), 0) + row_start
            mask = (row_ids < n_total).astype(jnp.float32)            # (tile_n, 1)
            n_t = jnp.minimum(n_total - row_start, tile_n).astype(jnp.float32)

            # Per-tile mean / centered second moment from a single pass over h,
            # merged Chan-style so the f32 variance stays accurate for large N.
            mu_t = jnp.sum(h * mask, axis=0, keepdims=True) * (1.0 / n_t)
            d = (h - mu_t) * mask
            m2_t = jnp.sum(d * d, axis=0, keepdims=True)

            n_a = (i * tile_n).astype(jnp.float32)     # rows merged so far
            n_new = n_a + n_t
            delta = mu_t - mean_ref[...]
            mean_ref[...] = mean_ref[...] + delta * (n_t / n_new)
            m2_ref[...] = m2_ref[...] + m2_t + (delta * delta) * (n_a * n_t / n_new)

        @pl.when(p == 1)
        def _normalize_project():
            # Train-mode BatchNorm1d: biased variance over all N rows, f32 math.
            var = m2_ref[...] * (1.0 / n_total)
            rstd = jax.lax.rsqrt(var + BN_EPS)
            h_act = jnp.maximum(
                (h - mean_ref[...]) * rstd * g_ref[...] + be_ref[...], 0.0)
            # Linear 2 on the MXU: bf16 operands, f32 accumulation; lane-dense store.
            out = jnp.dot(h_act.astype(jnp.bfloat16), w2_ref[...],
                          preferred_element_type=jnp.float32) + b2_ref[...]
            o_ref[...] = out.astype(o_ref.dtype)

    return kernel


def mlp_head(x, w1, b1, gamma, beta, w2, b2, *, tile_n=None):
    """x: (B, L, C) -> (B, L, C). Forward of MLPHead (train-mode batch-stats BN)."""
    B, L, C = x.shape
    N = B * L
    Cw, P = w1.shape
    assert Cw == C and w2.shape == (P, C)

    C_pad = _round_up(C, LANE)
    P_pad = _round_up(P, LANE)

    if tile_n is None:
        tile_n = DEFAULT_TILE_N
    tile_n = max(8, _round_up(min(tile_n, _round_up(N, 8)), 8))
    n_tiles = (N + tile_n - 1) // tile_n
    n_pad = n_tiles * tile_n

    # Zero-pad rows to the tile grid and feature dims to the 128-lane width.
    # MXU operands (x, W1, W2) are stored as bf16; everything else stays f32.
    x2 = jnp.pad(x.reshape(N, C).astype(jnp.bfloat16),
                 ((0, n_pad - N), (0, C_pad - C)))
    w1p = jnp.pad(w1.astype(jnp.bfloat16), ((0, C_pad - C), (0, P_pad - P)))
    w2p = jnp.pad(w2.astype(jnp.bfloat16), ((0, P_pad - P), (0, C_pad - C)))
    b1p = jnp.pad(b1.reshape(1, P).astype(jnp.float32), ((0, 0), (0, P_pad - P)))
    gp = jnp.pad(gamma.reshape(1, P).astype(jnp.float32), ((0, 0), (0, P_pad - P)))
    bep = jnp.pad(beta.reshape(1, P).astype(jnp.float32), ((0, 0), (0, P_pad - P)))
    b2p = jnp.pad(b2.reshape(1, C).astype(jnp.float32), ((0, 0), (0, C_pad - C)))

    out = pl.pallas_call(
        _make_kernel(N, tile_n),
        out_shape=jax.ShapeDtypeStruct((n_pad, C_pad), x.dtype),
        grid=(2, n_tiles),
        in_specs=[
            pl.BlockSpec((tile_n, C_pad), lambda p, i: (i, 0)),   # x tiles (pipelined)
            pl.BlockSpec((C_pad, P_pad), lambda p, i: (0, 0)),    # W1 (resident)
            pl.BlockSpec((1, P_pad), lambda p, i: (0, 0)),        # b1
            pl.BlockSpec((1, P_pad), lambda p, i: (0, 0)),        # gamma
            pl.BlockSpec((1, P_pad), lambda p, i: (0, 0)),        # beta
            pl.BlockSpec((P_pad, C_pad), lambda p, i: (0, 0)),    # W2 (resident)
            pl.BlockSpec((1, C_pad), lambda p, i: (0, 0)),        # b2
        ],
        # p*i parks the output block at 0 for the whole stats pass, so the only
        # HBM writebacks are the lane-dense pass-1 stores (no garbage writebacks).
        out_specs=pl.BlockSpec((tile_n, C_pad), lambda p, i: (p * i, 0)),
        scratch_shapes=[pltpu.VMEM((1, P_pad), jnp.float32),   # running mean
                        pltpu.VMEM((1, P_pad), jnp.float32)],  # running centered M2
        compiler_params=pltpu.CompilerParams(
            dimension_semantics=("arbitrary", "arbitrary")),
    )(x2, w1p, b1p, gp, bep, w2p, b2p)

    return out[:N, :C].reshape(B, L, C)


def init_params(key, embedding_size, projection_hidden_size):
    """Deterministic synthetic init matching the PyTorch module's shapes."""
    k1, k2, k3, k4 = jax.random.split(key, 4)
    C, P = embedding_size, projection_hidden_size
    # nn.Linear(C, P): torch weight is (P, C); stored transposed as (C, P).
    bound1 = float(C) ** -0.5
    w1 = jax.random.uniform(k1, (C, P), jnp.float32, -bound1, bound1)
    b1 = jax.random.uniform(k2, (1, P), jnp.float32, -bound1, bound1)
    # nn.BatchNorm1d(P): gamma = 1, beta = 0.
    gamma = jnp.ones((1, P), jnp.float32)
    beta = jnp.zeros((1, P), jnp.float32)
    # nn.Linear(P, C): torch weight is (C, P); stored transposed as (P, C).
    bound2 = float(P) ** -0.5
    w2 = jax.random.uniform(k3, (P, C), jnp.float32, -bound2, bound2)
    b2 = jax.random.uniform(k4, (1, C), jnp.float32, -bound2, bound2)
    return w1, b1, gamma, beta, w2, b2


def reference_forward(x, w1, b1, gamma, beta, w2, b2, matmul_dtype=jnp.float32):
    """Pure-JAX reference of the PyTorch forward (train-mode batch-stats BN).
    matmul_dtype=bfloat16 mirrors the kernel's MXU numerics."""
    B, L, C = x.shape
    xf = x.reshape(-1, C)
    h = jnp.dot(xf.astype(matmul_dtype), w1.astype(matmul_dtype),
                preferred_element_type=jnp.float32) + b1
    mean = jnp.mean(h, axis=0, keepdims=True)
    var = jnp.mean((h - mean) ** 2, axis=0, keepdims=True)
    h = (h - mean) / jnp.sqrt(var + BN_EPS) * gamma + beta
    h = jnp.maximum(h, 0.0)
    out = jnp.dot(h.astype(matmul_dtype), w2.astype(matmul_dtype),
                  preferred_element_type=jnp.float32) + b2
    return out.reshape(B, L, C)


if __name__ == "__main__":
    # cfg.MODEL.EMBEDDER_MODEL.EMBEDDING_SIZE = 32, cfg.MODEL.PROJECTION_SIZE = 64
    B, L, C, P = 2, 8, 32, 64

    key = jax.random.PRNGKey(0)
    kx, kp = jax.random.split(key)
    x = jax.random.normal(kx, (B, L, C), jnp.float32)
    params = init_params(kp, C, P)

    # tile_n=8 so even this tiny example exercises the multi-tile two-pass BN path.
    out = jax.block_until_ready(mlp_head(x, *params, tile_n=8))
    assert out.shape == (B, L, C) and out.dtype == x.dtype

    # Tight check vs a reference that mirrors the kernel's bf16-MXU numerics.
    ref_bf16 = reference_forward(x, *params, matmul_dtype=jnp.bfloat16)
    assert jnp.allclose(out, ref_bf16, atol=5e-3, rtol=5e-3), \
        "mismatch vs bf16-matmul reference"

    # Loose check vs the full-f32 PyTorch-semantics reference
    # (difference is only bf16 rounding of the MXU operands).
    ref_f32 = reference_forward(x, *params, matmul_dtype=jnp.float32)
    assert jnp.allclose(out, ref_f32, atol=5e-2, rtol=5e-2), \
        "mismatch vs f32 reference"

    # Also exercise the default (single-tile) tiling path.
    out_default = jax.block_until_ready(mlp_head(x, *params))
    assert jnp.allclose(out_default, ref_bf16, atol=5e-3, rtol=5e-3)

    print("KERNEL_OK")
</pallas_src>

<mosaic_0001>
module attributes {stable_mosaic.version = 11 : i64} {
  func.func @kernel(%arg0: i32, %arg1: i32, %arg2: memref<8x128xbf16, #tpu.memory_space<vmem>>, %arg3: memref<128x128xbf16, #tpu.memory_space<vmem>>, %arg4: memref<1x128xf32, #tpu.memory_space<vmem>>, %arg5: memref<1x128xf32, #tpu.memory_space<vmem>>, %arg6: memref<1x128xf32, #tpu.memory_space<vmem>>, %arg7: memref<128x128xbf16, #tpu.memory_space<vmem>>, %arg8: memref<1x128xf32, #tpu.memory_space<vmem>>, %arg9: memref<8x128xf32, #tpu.memory_space<vmem>>, %arg10: memref<1x128xf32, #tpu.memory_space<vmem>>, %arg11: memref<1x128xf32, #tpu.memory_space<vmem>>) attributes {dimension_semantics = [#tpu.dimension_semantics<arbitrary>, #tpu.dimension_semantics<arbitrary>], iteration_bounds = array<i64: 2, 2>, scalar_prefetch = 0 : i64, scratch_operands = 2 : i64, tpu.core_type = #tpu.core_type<tc>, window_params = [{transform_indices = @transform_0, window_bounds = array<i64: 8, 128>}, {pipeline_mode = #tpu.pipeline_mode<synchronous>, transform_indices = @transform_1, window_bounds = array<i64: 128, 128>}, {pipeline_mode = #tpu.pipeline_mode<synchronous>, transform_indices = @transform_2, window_bounds = array<i64: 1, 128>}, {pipeline_mode = #tpu.pipeline_mode<synchronous>, transform_indices = @transform_3, window_bounds = array<i64: 1, 128>}, {pipeline_mode = #tpu.pipeline_mode<synchronous>, transform_indices = @transform_4, window_bounds = array<i64: 1, 128>}, {pipeline_mode = #tpu.pipeline_mode<synchronous>, transform_indices = @transform_5, window_bounds = array<i64: 128, 128>}, {pipeline_mode = #tpu.pipeline_mode<synchronous>, transform_indices = @transform_6, window_bounds = array<i64: 1, 128>}, {transform_indices = @transform_7, window_bounds = array<i64: 8, 128>}]} {
    %c0_i32 = arith.constant 0 : i32
    %0 = arith.cmpi eq, %arg0, %c0_i32 : i32
    %c0_i32_0 = arith.constant 0 : i32
    %1 = arith.cmpi eq, %arg1, %c0_i32_0 : i32
    %2 = arith.andi %0, %1 : i1
    %3 = arith.extui %2 : i1 to i32
    %c0_i32_1 = arith.constant 0 : i32
    %4 = arith.cmpi ne, %3, %c0_i32_1 : i32
    scf.if %4 {
      %cst_10 = arith.constant 0.000000e+00 : f32
      %17 = vector.broadcast %cst_10 : f32 to vector<1x128xf32>
      %c0_11 = arith.constant 0 : index
      %c0_12 = arith.constant 0 : index
      %18 = vector.load %arg10[%c0_11, %c0_12] : memref<1x128xf32, #tpu.memory_space<vmem>>, vector<1x128xf32>
      tpu.vector_store %arg10[%c0_11, %c0_12], %17 {strides = array<i32>} : memref<1x128xf32, #tpu.memory_space<vmem>>, vector<1x128xf32>,
      %cst_13 = arith.constant 0.000000e+00 : f32
      %19 = vector.broadcast %cst_13 : f32 to vector<1x128xf32>
      %c0_14 = arith.constant 0 : index
      %c0_15 = arith.constant 0 : index
      %20 = vector.load %arg11[%c0_14, %c0_15] : memref<1x128xf32, #tpu.memory_space<vmem>>, vector<1x128xf32>
      tpu.vector_store %arg11[%c0_14, %c0_15], %19 {strides = array<i32>} : memref<1x128xf32, #tpu.memory_space<vmem>>, vector<1x128xf32>,
    } else {
    }
    %c0 = arith.constant 0 : index
    %c0_2 = arith.constant 0 : index
    %5 = vector.load %arg2[%c0, %c0_2] : memref<8x128xbf16, #tpu.memory_space<vmem>>, vector<8x128xbf16>
    %c0_3 = arith.constant 0 : index
    %c0_4 = arith.constant 0 : index
    %6 = vector.load %arg3[%c0_3, %c0_4] : memref<128x128xbf16, #tpu.memory_space<vmem>>, vector<128x128xbf16>
    %cst = arith.constant dense<0.000000e+00> : vector<8x128xf32>
    %7 = tpu.matmul %5, %6, %cst {dimension_numbers = #tpu.dot_dimension_numbers<[1], [0], [0], [1], [0, 0, 1, 1], [], []>} : vector<8x128xbf16>, vector<128x128xbf16>, vector<8x128xf32> -> vector<8x128xf32>
    %c0_5 = arith.constant 0 : index
    %c0_6 = arith.constant 0 : index
    %8 = vector.load %arg4[%c0_5, %c0_6] : memref<1x128xf32, #tpu.memory_space<vmem>>, vector<1x128xf32>
    %9 = vector.broadcast %8 : vector<1x128xf32> to vector<8x128xf32>
    %10 = arith.addf %7, %9 : vector<8x128xf32>
    %c0_i32_7 = arith.constant 0 : i32
    %11 = arith.cmpi eq, %arg0, %c0_i32_7 : i32
    %12 = arith.extui %11 : i1 to i32
    %c0_i32_8 = arith.constant 0 : i32
    %13 = arith.cmpi ne, %12, %c0_i32_8 : i32
    scf.if %13 {
      %c8_i32 = arith.constant 8 : i32
      %17 = arith.muli %arg1, %c8_i32 : i32
      %18 = tpu.iota {dimensions = array<i32: 0>} : vector<8x1xi32>
      %19 = vector.broadcast %17 : i32 to vector<8x1xi32>
      %20 = arith.addi %18, %19 : vector<8x1xi32>
      %c16_i32 = arith.constant 16 : i32
      %21 = vector.broadcast %c16_i32 : i32 to vector<8x1xi32>
      %22 = arith.cmpi slt, %20, %21 : vector<8x1xi32>
      %23 = arith.extui %22 : vector<8x1xi1> to vector<8x1xi32>
      %24 = arith.sitofp %23 : vector<8x1xi32> to vector<8x1xf32>
      %c16_i32_10 = arith.constant 16 : i32
      %25 = arith.subi %c16_i32_10, %17 : i32
      %c8_i32_11 = arith.constant 8 : i32
      %26 = arith.minsi %25, %c8_i32_11 : i32
      %27 = arith.sitofp %26 : i32 to f32
      %28 = vector.broadcast %24 : vector<8x1xf32> to vector<8x128xf32>
      %29 = arith.mulf %10, %28 : vector<8x128xf32>
      %cst_12 = arith.constant dense<0.000000e+00> : vector<128xf32>
      %30 = vector.multi_reduction <add>, %29, %cst_12 [0] : vector<8x128xf32> to vector<128xf32>
      %31 = vector.shape_cast %30 : vector<128xf32> to vector<1x128xf32>
      %cst_13 = arith.constant 1.000000e+00 : f32
      %32 = arith.divf %cst_13, %27 : f32
      %33 = vector.broadcast %32 : f32 to vector<1x128xf32>
      %34 = arith.mulf %31, %33 : vector<1x128xf32>
      %35 = vector.broadcast %34 : vector<1x128xf32> to vector<8x128xf32>
      %36 = arith.subf %10, %35 : vector<8x128xf32>
      %37 = vector.broadcast %24 : vector<8x1xf32> to vector<8x128xf32>
      %38 = arith.mulf %36, %37 : vector<8x128xf32>
      %39 = arith.mulf %38, %38 : vector<8x128xf32>
      %cst_14 = arith.constant dense<0.000000e+00> : vector<128xf32>
      %40 = vector.multi_reduction <add>, %39, %cst_14 [0] : vector<8x128xf32> to vector<128xf32>
      %41 = vector.shape_cast %40 : vector<128xf32> to vector<1x128xf32>
      %c8_i32_15 = arith.constant 8 : i32
      %42 = arith.muli %arg1, %c8_i32_15 : i32
      %43 = arith.sitofp %42 : i32 to f32
      %44 = arith.addf %43, %27 : f32
      %c0_16 = arith.constant 0 : index
      %c0_17 = arith.constant 0 : index
      %45 = vector.load %arg10[%c0_16, %c0_17] : memref<1x128xf32, #tpu.memory_space<vmem>>, vector<1x128xf32>
      %46 = arith.subf %34, %45 : vector<1x128xf32>
      %c0_18 = arith.constant 0 : index
      %c0_19 = arith.constant 0 : index
      %47 = vector.load %arg10[%c0_18, %c0_19] : memref<1x128xf32, #tpu.memory_space<vmem>>, vector<1x128xf32>
      %48 = arith.divf %27, %44 : f32
      %49 = vector.broadcast %48 : f32 to vector<1x128xf32>
      %50 = arith.mulf %46, %49 : vector<1x128xf32>
      %51 = arith.addf %47, %50 : vector<1x128xf32>
      %c0_20 = arith.constant 0 : index
      %c0_21 = arith.constant 0 : index
      %52 = vector.load %arg10[%c0_20, %c0_21] : memref<1x128xf32, #tpu.memory_space<vmem>>, vector<1x128xf32>
      tpu.vector_store %arg10[%c0_20, %c0_21], %51 {strides = array<i32>} : memref<1x128xf32, #tpu.memory_space<vmem>>, vector<1x128xf32>,
      %c0_22 = arith.constant 0 : index
      %c0_23 = arith.constant 0 : index
      %53 = vector.load %arg11[%c0_22, %c0_23] : memref<1x128xf32, #tpu.memory_space<vmem>>, vector<1x128xf32>
      %54 = arith.addf %53, %41 : vector<1x128xf32>
      %55 = arith.mulf %46, %46 : vector<1x128xf32>
      %56 = arith.mulf %43, %27 : f32
      %57 = arith.divf %56, %44 : f32
      %58 = vector.broadcast %57 : f32 to vector<1x128xf32>
      %59 = arith.mulf %55, %58 : vector<1x128xf32>
      %60 = arith.addf %54, %59 : vector<1x128xf32>
      %c0_24 = arith.constant 0 : index
      %c0_25 = arith.constant 0 : index
      %61 = vector.load %arg11[%c0_24, %c0_25] : memref<1x128xf32, #tpu.memory_space<vmem>>, vector<1x128xf32>
      tpu.vector_store %arg11[%c0_24, %c0_25], %60 {strides = array<i32>} : memref<1x128xf32, #tpu.memory_space<vmem>>, vector<1x128xf32>,
    } else {
    }
    %c1_i32 = arith.constant 1 : i32
    %14 = arith.cmpi eq, %arg0, %c1_i32 : i32
    %15 = arith.extui %14 : i1 to i32
    %c0_i32_9 = arith.constant 0 : i32
    %16 = arith.cmpi ne, %15, %c0_i32_9 : i32
    scf.if %16 {
      %c0_10 = arith.constant 0 : index
      %c0_11 = arith.constant 0 : index
      %17 = vector.load %arg11[%c0_10, %c0_11] : memref<1x128xf32, #tpu.memory_space<vmem>>, vector<1x128xf32>
      %cst_12 = arith.constant 6.250000e-02 : f32
      %18 = vector.broadcast %cst_12 : f32 to vector<1x128xf32>
      %19 = arith.mulf %17, %18 : vector<1x128xf32>
      %cst_13 = arith.constant 9.99999974E-6 : f32
      %20 = vector.broadcast %cst_13 : f32 to vector<1x128xf32>
      %21 = arith.addf %19, %20 : vector<1x128xf32>
      %22 = math.rsqrt %21 : vector<1x128xf32>
      %c0_14 = arith.constant 0 : index
      %c0_15 = arith.constant 0 : index
      %23 = vector.load %arg10[%c0_14, %c0_15] : memref<1x128xf32, #tpu.memory_space<vmem>>, vector<1x128xf32>
      %24 = vector.broadcast %23 : vector<1x128xf32> to vector<8x128xf32>
      %25 = arith.subf %10, %24 : vector<8x128xf32>
      %26 = vector.broadcast %22 : vector<1x128xf32> to vector<8x128xf32>
      %27 = arith.mulf %25, %26 : vector<8x128xf32>
      %c0_16 = arith.constant 0 : index
      %c0_17 = arith.constant 0 : index
      %28 = vector.load %arg5[%c0_16, %c0_17] : memref<1x128xf32, #tpu.memory_space<vmem>>, vector<1x128xf32>
      %29 = vector.broadcast %28 : vector<1x128xf32> to vector<8x128xf32>
      %30 = arith.mulf %27, %29 : vector<8x128xf32>
      %c0_18 = arith.constant 0 : index
      %c0_19 = arith.constant 0 : index
      %31 = vector.load %arg6[%c0_18, %c0_19] : memref<1x128xf32, #tpu.memory_space<vmem>>, vector<1x128xf32>
      %32 = vector.broadcast %31 : vector<1x128xf32> to vector<8x128xf32>
      %33 = arith.addf %30, %32 : vector<8x128xf32>
      %cst_20 = arith.constant 0.000000e+00 : f32
      %34 = vector.broadcast %cst_20 : f32 to vector<8x128xf32>
      %35 = arith.maximumf %33, %34 : vector<8x128xf32>
      %36 = arith.truncf %35 : vector<8x128xf32> to vector<8x128xbf16>
      %c0_21 = arith.constant 0 : index
      %c0_22 = arith.constant 0 : index
      %37 = vector.load %arg7[%c0_21, %c0_22] : memref<128x128xbf16, #tpu.memory_space<vmem>>, vector<128x128xbf16>
      %cst_23 = arith.constant dense<0.000000e+00> : vector<8x128xf32>
      %38 = tpu.matmul %36, %37, %cst_23 {dimension_numbers = #tpu.dot_dimension_numbers<[1], [0], [0], [1], [0, 0, 1, 1], [], []>} : vector<8x128xbf16>, vector<128x128xbf16>, vector<8x128xf32> -> vector<8x128xf32>
      %c0_24 = arith.constant 0 : index
      %c0_25 = arith.constant 0 : index
      %39 = vector.load %arg8[%c0_24, %c0_25] : memref<1x128xf32, #tpu.memory_space<vmem>>, vector<1x128xf32>
      %40 = vector.broadcast %39 : vector<1x128xf32> to vector<8x128xf32>
      %41 = arith.addf %38, %40 : vector<8x128xf32>
      %c0_26 = arith.constant 0 : index
      %c0_27 = arith.constant 0 : index
      %42 = vector.load %arg9[%c0_26, %c0_27] : memref<8x128xf32, #tpu.memory_space<vmem>>, vector<8x128xf32>
      tpu.vector_store %arg9[%c0_26, %c0_27], %41 {strides = array<i32>} : memref<8x128xf32, #tpu.memory_space<vmem>>, vector<8x128xf32>,
    } else {
    }
    return
  }
  func.func @transform_0(%arg0: i32, %arg1: i32) -> (i32, i32) {
    %c0_i32 = arith.constant 0 : i32
    %c0_i32_0 = arith.constant 0 : i32
    return %arg1, %c0_i32 : i32, i32
  }
  func.func @transform_1(%arg0: i32, %arg1: i32) -> (i32, i32) {
    %c0_i32 = arith.constant 0 : i32
    %c0_i32_0 = arith.constant 0 : i32
    %c0_i32_1 = arith.constant 0 : i32
    return %c0_i32, %c0_i32_0 : i32, i32
  }
  func.func @transform_2(%arg0: i32, %arg1: i32) -> (i32, i32) {
    %c0_i32 = arith.constant 0 : i32
    %c0_i32_0 = arith.constant 0 : i32
    %c0_i32_1 = arith.constant 0 : i32
    return %c0_i32, %c0_i32_0 : i32, i32
  }
  func.func @transform_3(%arg0: i32, %arg1: i32) -> (i32, i32) {
    %c0_i32 = arith.constant 0 : i32
    %c0_i32_0 = arith.constant 0 : i32
    %c0_i32_1 = arith.constant 0 : i32
    return %c0_i32, %c0_i32_0 : i32, i32
  }
  func.func @transform_4(%arg0: i32, %arg1: i32) -> (i32, i32) {
    %c0_i32 = arith.constant 0 : i32
    %c0_i32_0 = arith.constant 0 : i32
    %c0_i32_1 = arith.constant 0 : i32
    return %c0_i32, %c0_i32_0 : i32, i32
  }
  func.func @transform_5(%arg0: i32, %arg1: i32) -> (i32, i32) {
    %c0_i32 = arith.constant 0 : i32
    %c0_i32_0 = arith.constant 0 : i32
    %c0_i32_1 = arith.constant 0 : i32
    return %c0_i32, %c0_i32_0 : i32, i32
  }
  func.func @transform_6(%arg0: i32, %arg1: i32) -> (i32, i32) {
    %c0_i32 = arith.constant 0 : i32
    %c0_i32_0 = arith.constant 0 : i32
    %c0_i32_1 = arith.constant 0 : i32
    return %c0_i32, %c0_i32_0 : i32, i32
  }
  func.func @transform_7(%arg0: i32, %arg1: i32) -> (i32, i32) {
    %0 = arith.muli %arg0, %arg1 : i32
    %c0_i32 = arith.constant 0 : i32
    %c0_i32_0 = arith.constant 0 : i32
    return %0, %c0_i32 : i32, i32
  }
}

</mosaic_0001>

<llo_original>
// kernel: tpu_custom_call.1
$region0: #{tpu_custom_call.1}
  #allocation0 [shape = 'u32[]', space=smem, size = 0x4, offset = 0x4, fixed_abs, tag = 'smem constant byte address 0x4 - core index']
  #allocation1 [shape = 'u32[144,128]{1,0:T(1,128)}', space=vmem, size = 0x12000, scoped, tag = 'internal scratch']
  #allocation2 [shape = 'f32[1,128]{1,0:T(1,128)}', space=vmem, size = 0x200, scoped, tag = 'scratch operand']
  #allocation3 [shape = 'f32[1,128]{1,0:T(1,128)}', space=vmem, size = 0x200, scoped, tag = 'scratch operand']
  %s0 = inlined_call_operand.hbm [shape: bf16[16,128], index: 0, kind: input, shape index: {}]
  %s1 = inlined_call_operand.hbm [shape: bf16[128,128], index: 1, kind: input, shape index: {}]
  %s2 = inlined_call_operand.vmem [shape: f32[1,128], index: 2, kind: input, shape index: {}]
  %s3 = inlined_call_operand.vmem [shape: f32[1,128], index: 3, kind: input, shape index: {}]
  %s4 = inlined_call_operand.vmem [shape: f32[1,128], index: 4, kind: input, shape index: {}]
  %s5 = inlined_call_operand.hbm [shape: bf16[128,128], index: 5, kind: input, shape index: {}]
  %s6 = inlined_call_operand.vmem [shape: f32[1,128], index: 6, kind: input, shape index: {}]
  %s7 = inlined_call_operand.hbm [shape: f32[16,128], index: 7, kind: output, shape index: {}]
  %s8 = sld [smem:[#allocation0]]
  $region85: #{tpu_custom_call.1} parent=0
    _
  %s10 = ssub.s32 1, %s8
  %s11 = scalar_select 0, %s10, %s8
  $region1: #{tpu_custom_call.1} parent=0
    #allocation4 [shape = 'u8[4096]{0}', space=vmem, size = 0x1000, scoped, tag = 'input window, operand 0']
    #allocation5 [shape = 's32[2]{0}', space=sflag, size = 0x8, scoped, tag = 'scoped memory for tpu_custom_call.1']
    #allocation6 [shape = 's32[2]{0}', space=sflag, size = 0x8, scoped, tag = 'scoped memory for tpu_custom_call.1']
    #allocation7 [shape = 'u8[32768]{0}', space=vmem, size = 0x8000, scoped, tag = 'input window, operand 1, single buffered']
    #allocation8 [shape = 's32[1]{0}', space=sflag, size = 0x4, scoped, tag = 'scoped memory for tpu_custom_call.1']
    #allocation9 [shape = 'u8[32768]{0}', space=vmem, size = 0x8000, scoped, tag = 'input window, operand 5, single buffered']
    #allocation10 [shape = 'u8[8192]{0}', space=vmem, size = 0x2000, scoped, tag = 'output window, operand 0']
    %12 = vsyncpa [#allocation5], 0
    %s13 = scalar_lea.sflag [#allocation5], 1
    %14 = vsyncpa %s13, 0
    %15 = vsyncpa [#allocation8], 0
    %16 = vsyncpa [#allocation6], 0
    %s17 = scalar_lea.sflag [#allocation6], 1
    %18 = vsyncpa %s17, 0
    loop: start=0, step=1, limit=6
    $region2: #{tpu_custom_call.1} parent=1 // loop_pre_header
      _
    $region3: #{tpu_custom_call.1} parent=1 // loop_header
      %s20 = sphi 0, %s24
      %p21 = scmp.ge.s32.totalorder %s20, 6
      %s27 = sphi 0, %s39
      %s28 = sphi 0, %s35
      %s29 = sphi 0, %s27
      %s30 = sphi 0, %s28
      %s31 = sphi 0, %s29
      %s32 = sphi 0, %s30
      %s42 = sphi 0, %s44
      %s45 = sphi 0, %s42
      %s46 = sphi 0, %s45
      %s62 = sphi 0, %s46
      %s66 = sphi 0, %s66
      %s68 = sphi 0, %s66
      %s69 = sphi 0, %s68
      %s83 = sphi 0, %s69
      %s87 = sphi 0, %s87
      %s89 = sphi 0, %s87
      %s90 = sphi 0, %s89
      %s104 = sphi 0, %s90
      %s108 = sphi 0, %s108
      %s110 = sphi 0, %s108
      %s111 = sphi 0, %s110
      %s125 = sphi 0, %s111
      %s129 = sphi 0, %s129
      %s131 = sphi 0, %s129
      %s132 = sphi 0, %s131
      %s146 = sphi 0, %s132
      %s150 = sphi 0, %s150
      %s152 = sphi 0, %s150
      %s153 = sphi 0, %s152
      %s167 = sphi 0, %s153
      %s171 = sphi 0, %s171
      %s173 = sphi 0, %s171
      %s174 = sphi 0, %s173
      %s188 = sphi 0, %s174
      %s196 = sphi 0, %s198
      %s199 = sphi 0, %s196
      %s200 = sphi 0, %s199
      %s216 = sphi 0, %s200
    $region4: #{tpu_custom_call.1} parent=1 // loop_header_branch
      %23 = sbr.rel (%p21) target = $region8
    $region5: #{tpu_custom_call.1} parent=1 // loop_body
      %s25 = ssub.s32 %s20, 1
      %s26 = ssub.s32 %s20, 2
      %s33 = sadd.s32 1, %s28
      %p34 = scmp.ge.s32.totalorder %s33, 2
      %s35 = scalar_select %p34, 0, %s33
      %s36 = sadd.s32 1, %s27
      %s37 = scalar_select %p34, %s36, %s27
      %p38 = scmp.ge.s32.totalorder %s37, 2
      %s39 = scalar_select %p38, 0, %s37
      %s40 = ssub.s32 %s28, %s35
      %p41 = scmp.eq.s32.totalorder %s40, 0
      %s43 = sadd.s32 %s42, 1
      %s44 = scalar_select %p41, %s42, %s43
      %p47 = pneg %p41
      %p48 = scmp.eq.s32.totalorder %s20, 3
      %p49 = por %p47, %p48
      %p50 = scmp.ne.s32.totalorder %s42, %s45
      %p51 = scmp.eq.s32.totalorder %s20, 0
      %p52 = por %p50, %p51
      %p53 = scmp.ne.s32.totalorder %s42, %s45
      %p54 = scmp.eq.s32.totalorder %s25, 3
      %p55 = por %p53, %p54
      %p56 = scmp.ne.s32.totalorder %s45, %s46
      %p57 = scmp.eq.s32.totalorder %s25, 0
      %p58 = por %p56, %p57
      %p59 = scmp.ne.s32.totalorder %s45, %s46
      %p60 = scmp.eq.s32.totalorder %s26, 3
      %p61 = por %p59, %p60
      %p63 = scmp.ne.s32.totalorder %s46, %s62
      %p64 = scmp.eq.s32.totalorder %s26, 0
      %p65 = por %p63, %p64
      %s67 = sadd.s32 %s66, 1
      %p70 = scmp.eq.s32.totalorder %s20, 3
      %p71 = scmp.ne.s32.totalorder %s66, %s68
      %p72 = scmp.eq.s32.totalorder %s20, 0
      %p73 = por %p71, %p72
      %p74 = scmp.ne.s32.totalorder %s66, %s68
      %p75 = scmp.eq.s32.totalorder %s25, 3
      %p76 = por %p74, %p75
      %p77 = scmp.ne.s32.totalorder %s68, %s69
      %p78 = scmp.eq.s32.totalorder %s25, 0
      %p79 = por %p77, %p78
      %p80 = scmp.ne.s32.totalorder %s68, %s69
      %p81 = scmp.eq.s32.totalorder %s26, 3
      %p82 = por %p80, %p81
      %p84 = scmp.ne.s32.totalorder %s69, %s83
      %p85 = scmp.eq.s32.totalorder %s26, 0
      %p86 = por %p84, %p85
      %s88 = sadd.s32 %s87, 1
      %p91 = scmp.eq.s32.totalorder %s20, 3
      %p92 = scmp.ne.s32.totalorder %s87, %s89
      %p93 = scmp.eq.s32.totalorder %s20, 0
      %p94 = por %p92, %p93
      %p95 = scmp.ne.s32.totalorder %s87, %s89
      %p96 = scmp.eq.s32.totalorder %s25, 3
      %p97 = por %p95, %p96
      %p98 = scmp.ne.s32.totalorder %s89, %s90
      %p99 = scmp.eq.s32.totalorder %s25, 0
      %p100 = por %p98, %p99
      %p101 = scmp.ne.s32.totalorder %s89, %s90
      %p102 = scmp.eq.s32.totalorder %s26, 3
      %p103 = por %p101, %p102
      %p105 = scmp.ne.s32.totalorder %s90, %s104
      %p106 = scmp.eq.s32.totalorder %s26, 0
      %p107 = por %p105, %p106
      %s109 = sadd.s32 %s108, 1
      %p112 = scmp.eq.s32.totalorder %s20, 3
      %p113 = scmp.ne.s32.totalorder %s108, %s110
      %p114 = scmp.eq.s32.totalorder %s20, 0
      %p115 = por %p113, %p114
      %p116 = scmp.ne.s32.totalorder %s108, %s110
      %p117 = scmp.eq.s32.totalorder %s25, 3
      %p118 = por %p116, %p117
      %p119 = scmp.ne.s32.totalorder %s110, %s111
      %p120 = scmp.eq.s32.totalorder %s25, 0
      %p121 = por %p119, %p120
      %p122 = scmp.ne.s32.totalorder %s110, %s111
      %p123 = scmp.eq.s32.totalorder %s26, 3
      %p124 = por %p122, %p123
      %p126 = scmp.ne.s32.totalorder %s111, %s125
      %p127 = scmp.eq.s32.totalorder %s26, 0
      %p128 = por %p126, %p127
      %s130 = sadd.s32 %s129, 1
      %p133 = scmp.eq.s32.totalorder %s20, 3
      %p134 = scmp.ne.s32.totalorder %s129, %s131
      %p135 = scmp.eq.s32.totalorder %s20, 0
      %p136 = por %p134, %p135
      %p137 = scmp.ne.s32.totalorder %s129, %s131
      %p138 = scmp.eq.s32.totalorder %s25, 3
      %p139 = por %p137, %p138
      %p140 = scmp.ne.s32.totalorder %s131, %s132
      %p141 = scmp.eq.s32.totalorder %s25, 0
      %p142 = por %p140, %p141
      %p143 = scmp.ne.s32.totalorder %s131, %s132
      %p144 = scmp.eq.s32.totalorder %s26, 3
      %p145 = por %p143, %p144
      %p147 = scmp.ne.s32.totalorder %s132, %s146
      %p148 = scmp.eq.s32.totalorder %s26, 0
      %p149 = por %p147, %p148
      %s151 = sadd.s32 %s150, 1
      %p154 = scmp.eq.s32.totalorder %s20, 3
      %p155 = scmp.ne.s32.totalorder %s150, %s152
      %p156 = scmp.eq.s32.totalorder %s20, 0
      %p157 = por %p155, %p156
      %p158 = scmp.ne.s32.totalorder %s150, %s152
      %p159 = scmp.eq.s32.totalorder %s25, 3
      %p160 = por %p158, %p159
      %p161 = scmp.ne.s32.totalorder %s152, %s153
      %p162 = scmp.eq.s32.totalorder %s25, 0
      %p163 = por %p161, %p162
      %p164 = scmp.ne.s32.totalorder %s152, %s153
      %p165 = scmp.eq.s32.totalorder %s26, 3
      %p166 = por %p164, %p165
      %p168 = scmp.ne.s32.totalorder %s153, %s167
      %p169 = scmp.eq.s32.totalorder %s26, 0
      %p170 = por %p168, %p169
      %s172 = sadd.s32 %s171, 1
      %p175 = scmp.eq.s32.totalorder %s20, 3
      %p176 = scmp.ne.s32.totalorder %s171, %s173
      %p177 = scmp.eq.s32.totalorder %s20, 0
      %p178 = por %p176, %p177
      %p179 = scmp.ne.s32.totalorder %s171, %s173
      %p180 = scmp.eq.s32.totalorder %s25, 3
      %p181 = por %p179, %p180
      %p182 = scmp.ne.s32.totalorder %s173, %s174
      %p183 = scmp.eq.s32.totalorder %s25, 0
      %p184 = por %p182, %p183
      %p185 = scmp.ne.s32.totalorder %s173, %s174
      %p186 = scmp.eq.s32.totalorder %s26, 3
      %p187 = por %p185, %p186
      %p189 = scmp.ne.s32.totalorder %s174, %s188
      %p190 = scmp.eq.s32.totalorder %s26, 0
      %p191 = por %p189, %p190
      %s192 = smul.u32 %s27, %s28
      %s193 = smul.u32 %s39, %s35
      %s194 = ssub.s32 %s192, %s193
      %p195 = scmp.eq.s32.totalorder %s194, 0
      %s197 = sadd.s32 %s196, 1
      %s198 = scalar_select %p195, %s196, %s197
      %p201 = pneg %p195
      %p202 = scmp.eq.s32.totalorder %s20, 3
      %p203 = por %p201, %p202
      %p204 = scmp.ne.s32.totalorder %s196, %s199
      %p205 = scmp.eq.s32.totalorder %s20, 0
      %p206 = por %p204, %p205
      %p207 = scmp.ne.s32.totalorder %s196, %s199
      %p208 = scmp.eq.s32.totalorder %s25, 3
      %p209 = por %p207, %p208
      %p210 = scmp.ne.s32.totalorder %s199, %s200
      %p211 = scmp.eq.s32.totalorder %s25, 0
      %p212 = por %p210, %p211
      %p213 = scmp.ne.s32.totalorder %s199, %s200
      %p214 = scmp.eq.s32.totalorder %s26, 3
      %p215 = por %p213, %p214
      %p217 = scmp.ne.s32.totalorder %s200, %s216
      %p218 = scmp.eq.s32.totalorder %s26, 0
      %p219 = por %p217, %p218
      %p220 = scmp.le.s32.totalorder 1, %s20
      %p221 = scmp.lt.s32.totalorder %s20, 5
      %p222 = pnand %p220, %p221
      %p223 = pneg %p222
      // Predicated region
      $region9: #{tpu_custom_call.1} parent=5 // pred_check
        _
      $region10: #{tpu_custom_call.1} parent=5 // pred_check_branch
        %225 = sbr.rel (%p222) target = $region12
      $region11: #{tpu_custom_call.1} parent=5 // pred_region
        %s226 = ssub.s32 %s20, 1
        // Predicated region
        $region13: #{tpu_custom_call.1} parent=11 // pred_check
          %p227 = pneg %p79
        $region14: #{tpu_custom_call.1} parent=11 // pred_check_branch
          %229 = sbr.rel (%p227) target = $region16
        $region15: #{tpu_custom_call.1} parent=11 // pred_region
          %s231 = ssub.s32 1024, 1024
          %232 = vsyncadd [#allocation8], %s231
          %s233 = sshll.u32 [#allocation7], 4
          %s234 = int_to_ptr.vmem [resolvable:$true] %s233
          %239 = dma.hbm_to_vmem [thread:$0]  %s1, 1024, %s234, [#allocation8], 64, 64, 4
        $region16: #{tpu_custom_call.1} parent=11 // pred_fallthru
          _
        // Predicated region
        $region17: #{tpu_custom_call.1} parent=11 // pred_check
          %p240 = pneg %p100
        $region18: #{tpu_custom_call.1} parent=11 // pred_check_branch
          %242 = sbr.rel (%p240) target = $region20
        $region19: #{tpu_custom_call.1} parent=11 // pred_region
          _
        $region20: #{tpu_custom_call.1} parent=11 // pred_fallthru
          _
        // Predicated region
        $region21: #{tpu_custom_call.1} parent=11 // pred_check
          %p243 = pneg %p121
        $region22: #{tpu_custom_call.1} parent=11 // pred_check_branch
          %245 = sbr.rel (%p243) target = $region24
        $region23: #{tpu_custom_call.1} parent=11 // pred_region
          _
        $region24: #{tpu_custom_call.1} parent=11 // pred_fallthru
          _
        // Predicated region
        $region25: #{tpu_custom_call.1} parent=11 // pred_check
          %p246 = pneg %p142
        $region26: #{tpu_custom_call.1} parent=11 // pred_check_branch
          %248 = sbr.rel (%p246) target = $region28
        $region27: #{tpu_custom_call.1} parent=11 // pred_region
          _
        $region28: #{tpu_custom_call.1} parent=11 // pred_fallthru
          _
        // Predicated region
        $region29: #{tpu_custom_call.1} parent=11 // pred_check
          %p249 = pneg %p163
        $region30: #{tpu_custom_call.1} parent=11 // pred_check_branch
          %251 = sbr.rel (%p249) target = $region32
        $region31: #{tpu_custom_call.1} parent=11 // pred_region
          %s253 = ssub.s32 1024, 1024
          %254 = vsyncadd [#allocation8], %s253
          %s255 = sshll.u32 [#allocation9], 4
          %s256 = int_to_ptr.vmem [resolvable:$true] %s255
          %261 = dma.hbm_to_vmem [thread:$0]  %s5, 1024, %s256, [#allocation8], 64, 64, 4
        $region32: #{tpu_custom_call.1} parent=11 // pred_fallthru
          _
        // Predicated region
        $region33: #{tpu_custom_call.1} parent=11 // pred_check
          %p262 = pneg %p184
        $region34: #{tpu_custom_call.1} parent=11 // pred_check_branch
          %264 = sbr.rel (%p262) target = $region36
        $region35: #{tpu_custom_call.1} parent=11 // pred_region
          _
        $region36: #{tpu_custom_call.1} parent=11 // pred_fallthru
          _
      $region12: #{tpu_custom_call.1} parent=5 // pred_fallthru
        _
      %p265 = scmp.lt.s32.totalorder %s20, 4
      // Predicated region
      $region37: #{tpu_custom_call.1} parent=5 // pred_check
        %p266 = pneg %p265
      $region38: #{tpu_custom_call.1} parent=5 // pred_check_branch
        %268 = sbr.rel (%p266) target = $region40
      $region39: #{tpu_custom_call.1} parent=5 // pred_region
        // Predicated region
        $region41: #{tpu_custom_call.1} parent=39 // pred_check
          %p269 = pneg %p52
        $region42: #{tpu_custom_call.1} parent=39 // pred_check_branch
          %271 = sbr.rel (%p269) target = $region44
        $region43: #{tpu_custom_call.1} parent=39 // pred_region
          %s272 = sand.u32 %s42, 1
          %s273 = scalar_lea.sflag [#allocation5], %s272
          %s274 = sand.u32 %s42, 1
          %s275 = smul.addr %s274, 4
          %s276 = scalar_lea.vmem [#allocation4], %s275
          %s278 = ssub.s32 64, 64
          %279 = vsyncadd %s273, %s278
          %s280 = smul.addr %s28, 64
          %s281 = scalar_lea.hbm %s0, %s280
          %s283 = sshll.u32 %s276, 4
          %s284 = int_to_ptr.vmem [resolvable:$true] %s283
          %286 = dma.hbm_to_vmem [thread:$0]  %s281, 64, %s284, %s273
        $region44: #{tpu_custom_call.1} parent=39 // pred_fallthru
          _
      $region40: #{tpu_custom_call.1} parent=5 // pred_fallthru
        _
      %p287 = scmp.le.s32.totalorder 1, %s20
      %p288 = scmp.lt.s32.totalorder %s20, 5
      %p289 = pnand %p287, %p288
      %p290 = pneg %p289
      // Predicated region
      $region45: #{tpu_custom_call.1} parent=5 // pred_check
        _
      $region46: #{tpu_custom_call.1} parent=5 // pred_check_branch
        %292 = sbr.rel (%p289) target = $region48
      $region47: #{tpu_custom_call.1} parent=5 // pred_region
        %s293 = ssub.s32 %s20, 1
        %s294 = sand.u32 %s45, 1
        %s295 = scalar_lea.sflag [#allocation5], %s294
        %s296 = sand.u32 %s45, 1
        %s297 = smul.addr %s296, 4
        %s298 = scalar_lea.vmem [#allocation4], %s297
        // Predicated region
        $region49: #{tpu_custom_call.1} parent=47 // pred_check
          %p299 = pneg %p58
        $region50: #{tpu_custom_call.1} parent=47 // pred_check_branch
          %301 = sbr.rel (%p299) target = $region52
        $region51: #{tpu_custom_call.1} parent=47 // pred_region
          %302 = dma.done %s295, 64
        $region52: #{tpu_custom_call.1} parent=47 // pred_fallthru
          _
        // Predicated region
        $region53: #{tpu_custom_call.1} parent=47 // pred_check
          %p303 = pneg %p79
        $region54: #{tpu_custom_call.1} parent=47 // pred_check_branch
          %305 = sbr.rel (%p303) target = $region56
        $region55: #{tpu_custom_call.1} parent=47 // pred_region
          %306 = dma.done [#allocation8], 1024
        $region56: #{tpu_custom_call.1} parent=47 // pred_fallthru
          _
        // Predicated region
        $region57: #{tpu_custom_call.1} parent=47 // pred_check
          %p307 = pneg %p163
        $region58: #{tpu_custom_call.1} parent=47 // pred_check_branch
          %309 = sbr.rel (%p307) target = $region60
        $region59: #{tpu_custom_call.1} parent=47 // pred_region
          %310 = dma.done [#allocation8], 1024
        $region60: #{tpu_custom_call.1} parent=47 // pred_fallthru
          _
        %s311 = sand.u32 %s45, 1
        %s312 = scalar_lea.sflag [#allocation5], %s311
        %s313 = sand.u32 %s45, 1
        %s314 = smul.addr %s313, 4
        %s315 = scalar_lea.vmem [#allocation4], %s314
        %p316 = pneg %p58
        %p317 = pneg %p55
        %p318 = pneg %p79
        %p319 = pneg %p76
        %p320 = pneg %p100
        %p321 = pneg %p97
        %p322 = pneg %p121
        %p323 = pneg %p118
        %p324 = pneg %p142
        %p325 = pneg %p139
        %p326 = pneg %p163
        %p327 = pneg %p160
        %p328 = pneg %p184
        %p329 = pneg %p181
        %p330 = pneg %p212
        %p331 = pneg %p209
        %s332 = sand.u32 %s199, 1
        %s333 = scalar_lea.sflag [#allocation6], %s332
        %s334 = sand.u32 %s199, 1
        %s335 = smul.addr %s334, 8
        %s336 = scalar_lea.vmem [#allocation10], %s335
        %s337 = smul.u32 %s29, %s30
        %p339 = scmp.eq.s32.totalorder %s29, 0
        %p340 = scmp.eq.s32.totalorder %s30, 0
        %p341 = pnand %p339, %p340
        %p342 = pneg %p341
        // Predicated region
        $region61: #{tpu_custom_call.1} parent=47 // pred_check
          _
        $region62: #{tpu_custom_call.1} parent=47 // pred_check_branch
          %344 = sbr.rel (%p341) target = $region64
        $region63: #{tpu_custom_call.1} parent=47 // pred_region
          %345 = vst [vmem:[#allocation2] sm:$0x1] 0.0
          %346 = vst [vmem:[#allocation3] sm:$0x1] 0.0
        $region64: #{tpu_custom_call.1} parent=47 // pred_fallthru
          _
        %v347 = vld [vmem:[%s298] sm:$0xf]
        %v348 = vld [vmem:[#allocation7] sm:$0xf]
        %v349 = vld [vmem:[#allocation7 + $0x4] sm:$0xf]
        %v350 = vld [vmem:[#allocation7 + $0x8] sm:$0xf]
        %v351 = vld [vmem:[#allocation7 + $0xc] sm:$0xf]
        %v352 = vld [vmem:[#allocation7 + $0x10] sm:$0xf]
        %v353 = vld [vmem:[#allocation7 + $0x14] sm:$0xf]
        %v354 = vld [vmem:[#allocation7 + $0x18] sm:$0xf]
        %v355 = vld [vmem:[#allocation7 + $0x1c] sm:$0xf]
        %v356 = vld [vmem:[#allocation7 + $0x20] sm:$0xf]
        %v357 = vld [vmem:[#allocation7 + $0x24] sm:$0xf]
        %v358 = vld [vmem:[#allocation7 + $0x28] sm:$0xf]
        %v359 = vld [vmem:[#allocation7 + $0x2c] sm:$0xf]
        %v360 = vld [vmem:[#allocation7 + $0x30] sm:$0xf]
        %v361 = vld [vmem:[#allocation7 + $0x34] sm:$0xf]
        %v362 = vld [vmem:[#allocation7 + $0x38] sm:$0xf]
        %v363 = vld [vmem:[#allocation7 + $0x3c] sm:$0xf]
        %v364 = vld [vmem:[%s2] sm:$0x1]
        %v366 = vlaneseq
        %v367 = vshrl.u32 %v366, 7
        %v368 = vsub.s32 0, %v367
        %v369 = vrot.slane %v364, %v368
        %v387 = vunpack.c.l.b16 %v348
        %v388 = vunpack.c.l.b16 %v349
        %v389 = vunpack.c.l.b16 %v350
        %v390 = vunpack.c.l.b16 %v351
        %v391 = vunpack.c.l.b16 %v352
        %v392 = vunpack.c.l.b16 %v353
        %v393 = vunpack.c.l.b16 %v354
        %v394 = vunpack.c.l.b16 %v355
        %v395 = vunpack.c.l.b16 %v356
        %v396 = vunpack.c.l.b16 %v357
        %v397 = vunpack.c.l.b16 %v358
        %v398 = vunpack.c.l.b16 %v359
        %v399 = vunpack.c.l.b16 %v360
        %v400 = vunpack.c.l.b16 %v361
        %v401 = vunpack.c.l.b16 %v362
        %v402 = vunpack.c.l.b16 %v363
        %v403 = vpack.c.b16 %v388, %v387
        %v404 = vpack.c.b16 %v390, %v389
        %v405 = vpack.c.b16 %v392, %v391
        %v406 = vpack.c.b16 %v394, %v393
        %v407 = vpack.c.b16 %v396, %v395
        %v408 = vpack.c.b16 %v398, %v397
        %v409 = vpack.c.b16 %v400, %v399
        %v410 = vpack.c.b16 %v402, %v401
        %419 = vmatprep.subr.bf16.mxu0 0
        %420 = vmatpush1.bf16.msra.mxu0 %v403
        %421 = vmatprep.subr.bf16.mxu0 0
        %422 = vmatpush1.bf16.msra.mxu0 %v404
        %423 = vmatprep.subr.bf16.mxu0 0
        %424 = vmatpush1.bf16.msra.mxu0 %v405
        %425 = vmatprep.subr.bf16.mxu0 0
        %426 = vmatpush1.bf16.msra.mxu0 %v406
        %427 = vmatprep.subr.bf16.mxu0 0
        %428 = vmatpush1.bf16.msra.mxu0 %v407
        %429 = vmatprep.subr.bf16.mxu0 0
        %430 = vmatpush1.bf16.msra.mxu0 %v408
        %431 = vmatprep.subr.bf16.mxu0 0
        %432 = vmatpush1.bf16.msra.mxu0 %v409
        %433 = vmatprep.subr.bf16.mxu0 0
        %434 = vmatpush1.bf16.msra.mxu0 %v410
        %435 = vmatprep.subr.bf16.mxu0 0
        %436 = vmatpush1.bf16.msra.mxu0 0
        %437 = vmatprep.subr.bf16.mxu0 0
        %438 = vmatpush1.bf16.msra.mxu0 0
        %439 = vmatprep.subr.bf16.mxu0 0
        %440 = vmatpush1.bf16.msra.mxu0 0
        %441 = vmatprep.subr.bf16.mxu0 0
        %442 = vmatpush1.bf16.msra.mxu0 0
        %443 = vmatprep.subr.bf16.mxu0 0
        %444 = vmatpush1.bf16.msra.mxu0 0
        %445 = vmatprep.subr.bf16.mxu0 0
        %446 = vmatpush1.bf16.msra.mxu0 0
        %447 = vmatprep.subr.bf16.mxu0 0
        %448 = vmatpush1.bf16.msra.mxu0 0
        %449 = vmatprep.subr.bf16.mxu0 0
        %450 = vmatpush1.bf16.msra.mxu0 0
        %451 = vmatprep.mubr.bf16.mxu0 0
        %452 = vmatmul.mubr.bf16.gmra.mrb[0].mxu0 %v347
        %v453 = vpop.f32.mrb[0].mxu0
        %v454 = vadd.f32 %v369, %v453
        %v455 = vpop.f32.mrb[0].mxu0
        %v456 = vpop.f32.mrb[0].mxu0
        %v457 = vpop.f32.mrb[0].mxu0
        %458 = vdwg.mxu0
        // Predicated region
        $region65: #{tpu_custom_call.1} parent=47 // pred_check
          %p459 = pneg %p339
        $region66: #{tpu_custom_call.1} parent=47 // pred_check_branch
          %461 = sbr.rel (%p459) target = $region68
        $region67: #{tpu_custom_call.1} parent=47 // pred_region
          %s462 = smul.u32 %s30, 8
          %v463 = vlaneseq
          %v464 = vshrl.u32 %v463, 7
          %v465 = vstv %s462
          %v466 = vadd.s32 %v464, %v465
          %vm467 = vcmp.lt.s32.totalorder %v466, 16
          %v468 = vsel %vm467, 1, 0
          %v469 = vcvt.s32.f32 %v468
          %s470 = ssub.s32 16, %s462
          %p471 = scmp.lt.s32.totalorder %s470, 8
          %s472 = scalar_select %p471, %s470, 8
          %s473 = scvt.s32.f32 %s472
          %v474 = vmul.f32 %v454, %v469
          %v475 = vrot.slane %v474, 4
          %v476 = vadd.f32 %v474, %v475
          %v477 = vrot.slane %v476, 2
          %v478 = vadd.f32 %v476, %v477
          %v479 = vrot.slane %v478, 1
          %v480 = vadd.f32 %v478, %v479
          %v481 = vstv %s473
          %v482 = vrcp.pop %v481
          %s483 = vtos %v482
          %v484 = vstv %s483
          %v485 = vmul.f32 %v480, %v484
          %v486 = vsub.f32 %v454, %v485
          %v487 = vmul.f32 %v486, %v469
          %v488 = vmul.f32 %v487, %v487
          %v489 = vrot.slane %v488, 4
          %v490 = vadd.f32 %v488, %v489
          %v491 = vrot.slane %v490, 2
          %v492 = vadd.f32 %v490, %v491
          %v493 = vrot.slane %v492, 1
          %v494 = vadd.f32 %v492, %v493
          %s495 = scvt.s32.f32 %s462
          %s496 = sadd.f32 %s495, %s473
          %v497 = vld [vmem:[#allocation2] sm:$0x1]
          %v498 = vsub.f32 %v485, %v497
          %v499 = vstv %s496
          %v500 = vrcp.pop %v499
          %s501 = vtos %v500
          %s502 = smul.f32 %s473, %s501
          %v503 = vstv %s502
          %v504 = vmul.f32 %v498, %v503
          %v505 = vadd.f32 %v497, %v504
          %506 = vst [vmem:[#allocation2] sm:$0x1] %v505
          %v507 = vld [vmem:[#allocation3] sm:$0x1]
          %v508 = vadd.f32 %v507, %v494
          %v509 = vmul.f32 %v498, %v498
          %s510 = smul.f32 %s495, %s473
          %v511 = vstv %s496
          %v512 = vrcp.pop %v511
          %s513 = vtos %v512
          %s514 = smul.f32 %s510, %s513
          %v515 = vstv %s514
          %v516 = vmul.f32 %v509, %v515
          %v517 = vadd.f32 %v508, %v516
          %518 = vst [vmem:[#allocation3] sm:$0x1] %v517
        $region68: #{tpu_custom_call.1} parent=47 // pred_fallthru
          _
        %p519 = scmp.eq.s32.totalorder %s29, 1
        // Predicated region
        $region69: #{tpu_custom_call.1} parent=47 // pred_check
          %p520 = pneg %p519
        $region70: #{tpu_custom_call.1} parent=47 // pred_check_branch
          %522 = sbr.rel (%p520) target = $region72
        $region71: #{tpu_custom_call.1} parent=47 // pred_region
          %v523 = vld [vmem:[#allocation3] sm:$0x1]
          %v524 = vmul.f32 %v523, 0.0625
          %v525 = vadd.f32 %v524, 1e-05
          %v526 = vrsqrt.pop %v525
          %v527 = vld [vmem:[#allocation2] sm:$0x1]
          %v529 = vlaneseq
          %v530 = vshrl.u32 %v529, 7
          %v531 = vsub.s32 0, %v530
          %v532 = vrot.slane %v527, %v531
          %v534 = vsub.f32 %v454, %v532
          %v536 = vlaneseq
          %v537 = vshrl.u32 %v536, 7
          %v538 = vsub.s32 0, %v537
          %v539 = vrot.slane %v526, %v538
          %v541 = vmul.f32 %v534, %v539
          %v542 = vld [vmem:[%s3] sm:$0x1]
          %v544 = vlaneseq
          %v545 = vshrl.u32 %v544, 7
          %v546 = vsub.s32 0, %v545
          %v547 = vrot.slane %v542, %v546
          %v549 = vmul.f32 %v541, %v547
          %v550 = vld [vmem:[%s4] sm:$0x1]
          %v552 = vlaneseq
          %v553 = vshrl.u32 %v552, 7
          %v554 = vsub.s32 0, %v553
          %v555 = vrot.slane %v550, %v554
          %v557 = vadd.f32 %v549, %v555
          %v558 = vmax.f32 %v557, 0.0
          %v559 = vpack.c.bf16 %v558, %v558
          %v560 = vld [vmem:[#allocation9] sm:$0xf]
          %v561 = vld [vmem:[#allocation9 + $0x4] sm:$0xf]
          %v562 = vld [vmem:[#allocation9 + $0x8] sm:$0xf]
          %v563 = vld [vmem:[#allocation9 + $0xc] sm:$0xf]
          %v564 = vld [vmem:[#allocation9 + $0x10] sm:$0xf]
          %v565 = vld [vmem:[#allocation9 + $0x14] sm:$0xf]
          %v566 = vld [vmem:[#allocation9 + $0x18] sm:$0xf]
          %v567 = vld [vmem:[#allocation9 + $0x1c] sm:$0xf]
          %v568 = vld [vmem:[#allocation9 + $0x20] sm:$0xf]
          %v569 = vld [vmem:[#allocation9 + $0x24] sm:$0xf]
          %v570 = vld [vmem:[#allocation9 + $0x28] sm:$0xf]
          %v571 = vld [vmem:[#allocation9 + $0x2c] sm:$0xf]
          %v572 = vld [vmem:[#allocation9 + $0x30] sm:$0xf]
          %v573 = vld [vmem:[#allocation9 + $0x34] sm:$0xf]
          %v574 = vld [vmem:[#allocation9 + $0x38] sm:$0xf]
          %v575 = vld [vmem:[#allocation9 + $0x3c] sm:$0xf]
          %v576 = vld [vmem:[%s6] sm:$0x1]
          %v578 = vlaneseq
          %v579 = vshrl.u32 %v578, 7
          %v580 = vsub.s32 0, %v579
          %v581 = vrot.slane %v576, %v580
          %v599 = vunpack.c.l.b16 %v560
          %v600 = vunpack.c.l.b16 %v561
          %v601 = vunpack.c.l.b16 %v562
          %v602 = vunpack.c.l.b16 %v563
          %v603 = vunpack.c.l.b16 %v564
          %v604 = vunpack.c.l.b16 %v565
          %v605 = vunpack.c.l.b16 %v566
          %v606 = vunpack.c.l.b16 %v567
          %v607 = vunpack.c.l.b16 %v568
          %v608 = vunpack.c.l.b16 %v569
          %v609 = vunpack.c.l.b16 %v570
          %v610 = vunpack.c.l.b16 %v571
          %v611 = vunpack.c.l.b16 %v572
          %v612 = vunpack.c.l.b16 %v573
          %v613 = vunpack.c.l.b16 %v574
          %v614 = vunpack.c.l.b16 %v575
          %v615 = vpack.c.b16 %v600, %v599
          %v616 = vpack.c.b16 %v602, %v601
          %v617 = vpack.c.b16 %v604, %v603
          %v618 = vpack.c.b16 %v606, %v605
          %v619 = vpack.c.b16 %v608, %v607
          %v620 = vpack.c.b16 %v610, %v609
          %v621 = vpack.c.b16 %v612, %v611
          %v622 = vpack.c.b16 %v614, %v613
          %631 = vmatprep.subr.bf16.mxu0 0
          %632 = vmatpush1.bf16.msra.mxu0 %v615
          %633 = vmatprep.subr.bf16.mxu0 0
          %634 = vmatpush1.bf16.msra.mxu0 %v616
          %635 = vmatprep.subr.bf16.mxu0 0
          %636 = vmatpush1.bf16.msra.mxu0 %v617
          %637 = vmatprep.subr.bf16.mxu0 0
          %638 = vmatpush1.bf16.msra.mxu0 %v618
          %639 = vmatprep.subr.bf16.mxu0 0
          %640 = vmatpush1.bf16.msra.mxu0 %v619
          %641 = vmatprep.subr.bf16.mxu0 0
          %642 = vmatpush1.bf16.msra.mxu0 %v620
          %643 = vmatprep.subr.bf16.mxu0 0
          %644 = vmatpush1.bf16.msra.mxu0 %v621
          %645 = vmatprep.subr.bf16.mxu0 0
          %646 = vmatpush1.bf16.msra.mxu0 %v622
          %647 = vmatprep.subr.bf16.mxu0 0
          %648 = vmatpush1.bf16.msra.mxu0 0
          %649 = vmatprep.subr.bf16.mxu0 0
          %650 = vmatpush1.bf16.msra.mxu0 0
          %651 = vmatprep.subr.bf16.mxu0 0
          %652 = vmatpush1.bf16.msra.mxu0 0
          %653 = vmatprep.subr.bf16.mxu0 0
          %654 = vmatpush1.bf16.msra.mxu0 0
          %655 = vmatprep.subr.bf16.mxu0 0
          %656 = vmatpush1.bf16.msra.mxu0 0
          %657 = vmatprep.subr.bf16.mxu0 0
          %658 = vmatpush1.bf16.msra.mxu0 0
          %659 = vmatprep.subr.bf16.mxu0 0
          %660 = vmatpush1.bf16.msra.mxu0 0
          %661 = vmatprep.subr.bf16.mxu0 0
          %662 = vmatpush1.bf16.msra.mxu0 0
          %663 = vmatprep.mubr.bf16.mxu0 0
          %664 = vmatmul.mubr.bf16.gmra.mrb[0].mxu0 %v559
          %v665 = vpop.f32.mrb[0].mxu0
          %v666 = vadd.f32 %v581, %v665
          %v667 = vpop.f32.mrb[0].mxu0
          %v668 = vpop.f32.mrb[0].mxu0
          %v669 = vpop.f32.mrb[0].mxu0
          %670 = vdwg.mxu0
          %671 = vst [vmem:[%s336] sm:$0xff] %v666
        $region72: #{tpu_custom_call.1} parent=47 // pred_fallthru
          _
        %s672 = sand.u32 %s199, 1
        %s673 = scalar_lea.sflag [#allocation6], %s672
        %s674 = sand.u32 %s199, 1
        %s675 = smul.addr %s674, 8
        %s676 = scalar_lea.vmem [#allocation10], %s675
        // Predicated region
        $region73: #{tpu_custom_call.1} parent=47 // pred_check
          %p677 = pneg %p209
        $region74: #{tpu_custom_call.1} parent=47 // pred_check_branch
          %679 = sbr.rel (%p677) target = $region76
        $region75: #{tpu_custom_call.1} parent=47 // pred_region
          %s680 = smul.u32 %s29, %s30
          %s682 = ssub.s32 128, 128
          %683 = vsyncadd %s673, %s682
          %s684 = smul.addr %s680, 128
          %s685 = scalar_lea.hbm %s7, %s684
          %s687 = sshll.u32 %s676, 4
          %s688 = int_to_ptr.vmem [resolvable:$true] %s687
          %690 = dma.vmem_to_hbm [thread:$0]  %s688, 128, %s685, %s673
        $region76: #{tpu_custom_call.1} parent=47 // pred_fallthru
          _
      $region48: #{tpu_custom_call.1} parent=5 // pred_fallthru
        _
      %p691 = scmp.le.s32.totalorder 2, %s20
      // Predicated region
      $region77: #{tpu_custom_call.1} parent=5 // pred_check
        %p692 = pneg %p691
      $region78: #{tpu_custom_call.1} parent=5 // pred_check_branch
        %694 = sbr.rel (%p692) target = $region80
      $region79: #{tpu_custom_call.1} parent=5 // pred_region
        %s695 = ssub.s32 %s20, 2
        // Predicated region
        $region81: #{tpu_custom_call.1} parent=79 // pred_check
          %p696 = pneg %p215
        $region82: #{tpu_custom_call.1} parent=79 // pred_check_branch
          %698 = sbr.rel (%p696) target = $region84
        $region83: #{tpu_custom_call.1} parent=79 // pred_region
          %s699 = sand.u32 %s200, 1
          %s700 = scalar_lea.sflag [#allocation6], %s699
          %s701 = sand.u32 %s200, 1
          %s702 = smul.addr %s701, 8
          %s703 = scalar_lea.vmem [#allocation10], %s702
          %704 = dma.done %s700, 128
        $region84: #{tpu_custom_call.1} parent=79 // pred_fallthru
          _
      $region80: #{tpu_custom_call.1} parent=5 // pred_fallthru
        _
    $region6: #{tpu_custom_call.1} parent=1 // loop_footer
      %s24 = sadd.s32 1, %s20
    $region7: #{tpu_custom_call.1} parent=1 // loop_footer_branch
      %19 = sbr.rel target = $region3
    $region8: #{tpu_custom_call.1} parent=1 // loop_exit
      _
    %705 = vsyncpa [#allocation5], 1
    %s706 = scalar_lea.sflag [#allocation5], 1
    %707 = vsyncpa %s706, 1
    %708 = vsyncpa [#allocation8], 1
    %709 = vsyncpa [#allocation6], 1
    %s710 = scalar_lea.sflag [#allocation6], 1
    %711 = vsyncpa %s710, 1

</llo_original>
